<compile_context>
chip_gen: v7x
topology: tpu7x:2x2x1
jax: 0.10.0
libtpu: 0.0.40
codegen_flags: <defaults>
</compile_context>

<pallas_src>
import jax
import jax.numpy as jnp
import numpy as np
from jax.experimental import pallas as pl
from jax.experimental.pallas import tpu as pltpu

# TODO(synk): `concat_lin_layers` is not provided; with the Encoder defaults
# (normalization_layer=None, activation_layer=nn.ReLU) each hidden block is
# assumed to be Linear -> ReLU (no norm layer). The `device` ctor arg has no
# Pallas analog.


def _round_up(x, m):
    return ((x + m - 1) // m) * m


# --------------------------------------------------------------------------- #
# Kernel
# --------------------------------------------------------------------------- #
def _make_encoder_kernel(pins, pouts, n_hidden):
    """pins/pouts: padded (in, out) widths per layer; last layer = fused head."""
    n_layers = len(pins)
    offs = [0]
    for p in pins:
        offs.append(offs[-1] + p)

    def kernel(x_ref, w_ref, b_ref, out_ref):
        h = x_ref[...]                                        # (bt, din0_pad) f32
        for j in range(n_layers):
            # Static, 8/128-aligned slices of the resident parameter slabs.
            w = w_ref[offs[j]:offs[j] + pins[j], :pouts[j]]
            b = b_ref[j:j + 1, :pouts[j]]                     # (1, pout_j) f32
            h = jnp.dot(h.astype(w_ref.dtype), w,
                        preferred_element_type=jnp.float32) + b
            if j < n_hidden:                                  # hidden blocks only
                h = jnp.maximum(h, 0.0)                       # ReLU
        out_ref[...] = h                                      # lane-dense [mu|logvar]

    return kernel


# --------------------------------------------------------------------------- #
# Parameter packing: one tile-aligned weight slab + one bias slab
# --------------------------------------------------------------------------- #
def _pack_params(params, input_dim, hidden_layers_dim, latent_dim, param_dtype):
    n_hidden = len(hidden_layers_dim)
    ws = [params[f"w{i}"] for i in range(n_hidden)]
    bs = [params[f"b{i}"] for i in range(n_hidden)]
    # Fuse mu / logvar heads along the output (lane) axis.
    ws.append(jnp.concatenate([params["wmu"], params["wlv"]], axis=1))
    bs.append(jnp.concatenate([params["bmu"], params["blv"]], axis=1))

    douts = list(hidden_layers_dim) + [2 * latent_dim]
    pouts = [_round_up(d, 128) for d in douts]                # lane-aligned outputs
    pins = [_round_up(input_dim, 8)] + pouts[:-1]             # sublane-aligned inputs
    max_pout = max(pouts)

    # Weight slab: layers concatenated along the sublane (row) axis.
    w_slab = jnp.concatenate([
        jnp.pad(w, ((0, pin - w.shape[0]), (0, max_pout - w.shape[1])))
        for w, pin in zip(ws, pins)
    ], axis=0).astype(param_dtype)                            # (sum(pins), max_pout)

    # Bias slab: one padded row per layer (zero padding is load-bearing:
    # padded channels must stay exactly zero through ReLU).
    b_slab = jnp.concatenate([
        jnp.pad(b, ((0, 0), (0, max_pout - b.shape[1]))) for b in bs
    ], axis=0).astype(jnp.float32)                            # (n_layers, max_pout)

    return w_slab, b_slab, pins, pouts


# --------------------------------------------------------------------------- #
# Wrapper
# --------------------------------------------------------------------------- #
def encoder_forward(x, params, hidden_layers_dim, latent_dim, *,
                    batch_tile=512, param_dtype=jnp.float32):
    x = x.astype(jnp.float32)
    B, D = x.shape
    n_hidden = len(hidden_layers_dim)

    w_slab, b_slab, pins, pouts = _pack_params(
        params, D, hidden_layers_dim, latent_dim, param_dtype)
    w_rows, max_pout = w_slab.shape
    n_layers = len(pins)
    din0_pad = pins[0]
    out_pad = pouts[-1]                                       # multiple of 128

    # ---- batch tile selection (bt always a multiple of 8) ------------------
    batch_tile = max(8, (batch_tile // 8) * 8)
    if B > batch_tile:
        bt = batch_tile
    else:
        # >= 2 grid steps when possible so 'parallel' axis can use both v7x TCs.
        bt = max(8, _round_up(-(-B // 2), 8))
    b_pad = _round_up(B, bt)
    grid = (b_pad // bt,)

    # ---- pad inputs (rows to b_pad, cols to din0_pad) -----------------------
    if (b_pad, din0_pad) != (B, D):
        x_in = jnp.pad(x, ((0, b_pad - B), (0, din0_pad - D)))
    else:
        x_in = x

    # ---- VMEM budget (resident params + double-buffered x/out + slack) -----
    vmem_need = (w_slab.size * w_slab.dtype.itemsize
                 + b_slab.size * 4
                 + 2 * bt * din0_pad * 4
                 + 2 * bt * out_pad * 4
                 + 4 * bt * max_pout * 4)
    vmem_limit = int(min(max(2 * vmem_need, 32 << 20), 64 << 20))

    per_row_flops = 2 * sum(pi * po for pi, po in zip(pins, pouts))
    cost = pl.CostEstimate(
        flops=int(b_pad * per_row_flops),
        transcendentals=0,
        bytes_accessed=int(x_in.size * 4
                           + w_slab.size * w_slab.dtype.itemsize
                           + b_slab.size * 4
                           + b_pad * out_pad * 4),
    )

    kernel = _make_encoder_kernel(pins, pouts, n_hidden)
    out = pl.pallas_call(
        kernel,
        out_shape=jax.ShapeDtypeStruct((b_pad, out_pad), jnp.float32),
        grid_spec=pltpu.PrefetchScalarGridSpec(
            num_scalar_prefetch=0,
            grid=grid,
            in_specs=[
                # x: batch-tiled, pipelined.
                pl.BlockSpec((bt, din0_pad), lambda i: (i, 0)),
                # weights / biases: whole-array, VMEM-resident (single copy,
                # no double buffering across the batch grid).
                pl.BlockSpec(memory_space=pltpu.MemorySpace.VMEM),
                pl.BlockSpec(memory_space=pltpu.MemorySpace.VMEM),
            ],
            out_specs=pl.BlockSpec((bt, out_pad), lambda i: (i, 0)),
        ),
        compiler_params=pltpu.CompilerParams(
            dimension_semantics=("parallel",),
            vmem_limit_bytes=vmem_limit),
        cost_estimate=cost,
    )(x_in, w_slab, b_slab)

    mu = out[:B, :latent_dim]
    logvar = out[:B, latent_dim:2 * latent_dim]
    return mu, logvar


# --------------------------------------------------------------------------- #
# Init + pure-JAX reference
# --------------------------------------------------------------------------- #
def _init_linear(key, fan_in, fan_out):
    # PyTorch nn.Linear default init: U(-1/sqrt(fan_in), 1/sqrt(fan_in)).
    kw, kb = jax.random.split(key)
    bound = 1.0 / np.sqrt(fan_in)
    w = jax.random.uniform(kw, (fan_in, fan_out), jnp.float32, -bound, bound)
    b = jax.random.uniform(kb, (1, fan_out), jnp.float32, -bound, bound)
    return w, b


def make_params(key, input_dim, hidden_layers_dim, latent_dim):
    dims = [input_dim] + list(hidden_layers_dim)
    keys = jax.random.split(key, len(hidden_layers_dim) + 2)
    p = {}
    for i in range(len(hidden_layers_dim)):
        p[f"w{i}"], p[f"b{i}"] = _init_linear(keys[i], dims[i], dims[i + 1])
    p["wmu"], p["bmu"] = _init_linear(keys[-2], dims[-1], latent_dim)
    p["wlv"], p["blv"] = _init_linear(keys[-1], dims[-1], latent_dim)
    return p


def _reference_forward(x, params, hidden_layers_dim, latent_dim,
                       param_dtype=jnp.float32):
    h = x
    for i in range(len(hidden_layers_dim)):
        w = params[f"w{i}"].astype(param_dtype)
        h = jnp.dot(h.astype(param_dtype), w,
                    preferred_element_type=jnp.float32) + params[f"b{i}"]
        h = jnp.maximum(h, 0.0)
    hm = h.astype(param_dtype)
    mu = jnp.dot(hm, params["wmu"].astype(param_dtype),
                 preferred_element_type=jnp.float32) + params["bmu"]
    logvar = jnp.dot(hm, params["wlv"].astype(param_dtype),
                     preferred_element_type=jnp.float32) + params["blv"]
    return mu, logvar


# --------------------------------------------------------------------------- #
# Demo
# --------------------------------------------------------------------------- #
if __name__ == "__main__":
    batch = 16
    input_dim = 32
    hidden_layers_dim = [32, 16]
    latent_dim = 3  # module default

    key = jax.random.PRNGKey(0)
    k_param, k_x = jax.random.split(key)
    params = make_params(k_param, input_dim, hidden_layers_dim, latent_dim)
    x = jax.random.normal(k_x, (batch, input_dim), jnp.float32)

    # f32 weights; B=16 <= batch_tile so the wrapper picks bt=8 -> grid=(2,)
    # ("parallel": shardable across both v7x TensorCores).
    mu, logvar = jax.block_until_ready(
        encoder_forward(x, params, hidden_layers_dim, latent_dim))
    r_mu, r_lv = _reference_forward(x, params, hidden_layers_dim, latent_dim)
    np.testing.assert_allclose(np.asarray(mu), np.asarray(r_mu), rtol=1e-2, atol=1e-2)
    np.testing.assert_allclose(np.asarray(logvar), np.asarray(r_lv), rtol=1e-2, atol=1e-2)

    # bf16 parameter storage (beneficial on v5e/v6e/v7x: halves parameter DMA
    # bytes / VMEM residency; matmuls still accumulate in f32).
    mu_b, logvar_b = jax.block_until_ready(
        encoder_forward(x, params, hidden_layers_dim, latent_dim,
                        param_dtype=jnp.bfloat16))
    r_mu_b, r_lv_b = _reference_forward(x, params, hidden_layers_dim, latent_dim,
                                        param_dtype=jnp.bfloat16)
    np.testing.assert_allclose(np.asarray(mu_b), np.asarray(r_mu_b), rtol=2e-2, atol=2e-2)
    np.testing.assert_allclose(np.asarray(logvar_b), np.asarray(r_lv_b), rtol=2e-2, atol=2e-2)

    print("KERNEL_OK")
</pallas_src>

<mosaic_0001>
module attributes {stable_mosaic.version = 11 : i64} {
  func.func @kernel(%arg0: i32, %arg1: memref<8x32xf32, #tpu.memory_space<vmem>>, %arg2: memref<288x128xf32, #tpu.memory_space<vmem>>, %arg3: memref<3x128xf32, #tpu.memory_space<vmem>>, %arg4: memref<8x128xf32, #tpu.memory_space<vmem>>) attributes {dimension_semantics = [#tpu.dimension_semantics<parallel>], iteration_bounds = array<i64: 2>, scalar_prefetch = 0 : i64, scratch_operands = 0 : i64, tpu.core_type = #tpu.core_type<tc>, window_params = [{transform_indices = @transform_0, window_bounds = array<i64: 8, 32>}, {pipeline_mode = #tpu.pipeline_mode<synchronous>, transform_indices = @transform_1, window_bounds = array<i64: 288, 128>}, {pipeline_mode = #tpu.pipeline_mode<synchronous>, transform_indices = @transform_2, window_bounds = array<i64: 3, 128>}, {transform_indices = @transform_3, window_bounds = array<i64: 8, 128>}]} {
    %c0 = arith.constant 0 : index
    %c0_0 = arith.constant 0 : index
    %0 = vector.load %arg1[%c0, %c0_0] : memref<8x32xf32, #tpu.memory_space<vmem>>, vector<8x32xf32>
    %c0_1 = arith.constant 0 : index
    %c0_2 = arith.constant 0 : index
    %1 = vector.load %arg2[%c0_1, %c0_2] : memref<288x128xf32, #tpu.memory_space<vmem>>, vector<32x128xf32>
    %c0_3 = arith.constant 0 : index
    %c0_4 = arith.constant 0 : index
    %2 = vector.load %arg3[%c0_3, %c0_4] : memref<3x128xf32, #tpu.memory_space<vmem>>, vector<1x128xf32>
    %cst = arith.constant dense<0.000000e+00> : vector<8x128xf32>
    %3 = tpu.matmul %0, %1, %cst {dimension_numbers = #tpu.dot_dimension_numbers<[1], [0], [0], [1], [0, 0, 1, 1], [], []>} : vector<8x32xf32>, vector<32x128xf32>, vector<8x128xf32> -> vector<8x128xf32>
    %4 = vector.broadcast %2 : vector<1x128xf32> to vector<8x128xf32>
    %5 = arith.addf %3, %4 : vector<8x128xf32>
    %cst_5 = arith.constant 0.000000e+00 : f32
    %6 = vector.broadcast %cst_5 : f32 to vector<8x128xf32>
    %7 = arith.maximumf %5, %6 : vector<8x128xf32>
    %c32 = arith.constant 32 : index
    %c0_6 = arith.constant 0 : index
    %8 = vector.load %arg2[%c32, %c0_6] : memref<288x128xf32, #tpu.memory_space<vmem>>, vector<128x128xf32>
    %c1 = arith.constant 1 : index
    %c0_7 = arith.constant 0 : index
    %9 = vector.load %arg3[%c1, %c0_7] : memref<3x128xf32, #tpu.memory_space<vmem>>, vector<1x128xf32>
    %cst_8 = arith.constant dense<0.000000e+00> : vector<8x128xf32>
    %10 = tpu.matmul %7, %8, %cst_8 {dimension_numbers = #tpu.dot_dimension_numbers<[1], [0], [0], [1], [0, 0, 1, 1], [], []>} : vector<8x128xf32>, vector<128x128xf32>, vector<8x128xf32> -> vector<8x128xf32>
    %11 = vector.broadcast %9 : vector<1x128xf32> to vector<8x128xf32>
    %12 = arith.addf %10, %11 : vector<8x128xf32>
    %cst_9 = arith.constant 0.000000e+00 : f32
    %13 = vector.broadcast %cst_9 : f32 to vector<8x128xf32>
    %14 = arith.maximumf %12, %13 : vector<8x128xf32>
    %c160 = arith.constant 160 : index
    %c0_10 = arith.constant 0 : index
    %15 = vector.load %arg2[%c160, %c0_10] : memref<288x128xf32, #tpu.memory_space<vmem>>, vector<128x128xf32>
    %c2 = arith.constant 2 : index
    %c0_11 = arith.constant 0 : index
    %16 = vector.load %arg3[%c2, %c0_11] : memref<3x128xf32, #tpu.memory_space<vmem>>, vector<1x128xf32>
    %cst_12 = arith.constant dense<0.000000e+00> : vector<8x128xf32>
    %17 = tpu.matmul %14, %15, %cst_12 {dimension_numbers = #tpu.dot_dimension_numbers<[1], [0], [0], [1], [0, 0, 1, 1], [], []>} : vector<8x128xf32>, vector<128x128xf32>, vector<8x128xf32> -> vector<8x128xf32>
    %18 = vector.broadcast %16 : vector<1x128xf32> to vector<8x128xf32>
    %19 = arith.addf %17, %18 : vector<8x128xf32>
    %c0_13 = arith.constant 0 : index
    %c0_14 = arith.constant 0 : index
    %20 = vector.load %arg4[%c0_13, %c0_14] : memref<8x128xf32, #tpu.memory_space<vmem>>, vector<8x128xf32>
    tpu.vector_store %arg4[%c0_13, %c0_14], %19 {strides = array<i32>} : memref<8x128xf32, #tpu.memory_space<vmem>>, vector<8x128xf32>,
    return
  }
  func.func @transform_0(%arg0: i32) -> (i32, i32) {
    %c0_i32 = arith.constant 0 : i32
    %c0_i32_0 = arith.constant 0 : i32
    return %arg0, %c0_i32 : i32, i32
  }
  func.func @transform_1(%arg0: i32) -> (i32, i32) {
    %c0_i32 = arith.constant 0 : i32
    %c0_i32_0 = arith.constant 0 : i32
    %c0_i32_1 = arith.constant 0 : i32
    return %c0_i32, %c0_i32_0 : i32, i32
  }
  func.func @transform_2(%arg0: i32) -> (i32, i32) {
    %c0_i32 = arith.constant 0 : i32
    %c0_i32_0 = arith.constant 0 : i32
    %c0_i32_1 = arith.constant 0 : i32
    return %c0_i32, %c0_i32_0 : i32, i32
  }
  func.func @transform_3(%arg0: i32) -> (i32, i32) {
    %c0_i32 = arith.constant 0 : i32
    %c0_i32_0 = arith.constant 0 : i32
    return %arg0, %c0_i32 : i32, i32
  }
}

</mosaic_0001>

<llo_original>
// kernel: tpu_custom_call.1
$region0: #{tpu_custom_call.1}
  #allocation0 [shape = 'u32[]', space=smem, size = 0x4, offset = 0x4, fixed_abs, tag = 'smem constant byte address 0x4 - core index']
  #allocation1 [shape = 'u32[144,128]{1,0:T(1,128)}', space=vmem, size = 0x12000, scoped, tag = 'internal scratch']
  %s0 = inlined_call_operand.hbm [shape: f32[16,32], index: 0, kind: input, shape index: {}]
  %s1 = inlined_call_operand.hbm [shape: f32[288,128], index: 1, kind: input, shape index: {}]
  %s2 = inlined_call_operand.vmem [shape: f32[3,128], index: 2, kind: input, shape index: {}]
  %s3 = inlined_call_operand.hbm [shape: f32[16,128], index: 3, kind: output, shape index: {}]
  %s4 = sld [smem:[#allocation0]]
  $region53: #{tpu_custom_call.1} parent=0
    _
  %s6 = ssub.s32 1, %s4
  %s7 = scalar_select 0, %s6, %s4
  $region1: #{tpu_custom_call.1} parent=0
    #allocation2 [shape = 'u8[8192]{0}', space=vmem, size = 0x2000, scoped, tag = 'input window, operand 0']
    #allocation3 [shape = 's32[2]{0}', space=sflag, size = 0x8, scoped, tag = 'scoped memory for tpu_custom_call.1']
    #allocation4 [shape = 's32[2]{0}', space=sflag, size = 0x8, scoped, tag = 'scoped memory for tpu_custom_call.1']
    #allocation5 [shape = 'u8[147456]{0}', space=vmem, size = 0x24000, scoped, tag = 'input window, operand 1, single buffered']
    #allocation6 [shape = 's32[1]{0}', space=sflag, size = 0x4, scoped, tag = 'scoped memory for tpu_custom_call.1']
    #allocation7 [shape = 'u8[8192]{0}', space=vmem, size = 0x2000, scoped, tag = 'output window, operand 0']
    %8 = vsyncpa [#allocation3], 0
    %s9 = scalar_lea.sflag [#allocation3], 1
    %10 = vsyncpa %s9, 0
    %11 = vsyncpa [#allocation6], 0
    %12 = vsyncpa [#allocation4], 0
    %s13 = scalar_lea.sflag [#allocation4], 1
    %14 = vsyncpa %s13, 0
    loop: start=0, step=1, limit=4
    $region2: #{tpu_custom_call.1} parent=1 // loop_pre_header
      _
    $region3: #{tpu_custom_call.1} parent=1 // loop_header
      %s16 = sphi 0, %s20
      %p17 = scmp.ge.s32.totalorder %s16, 4
      %s26 = sphi 0, %s28
      %s29 = sphi 0, %s26
      %s30 = sphi 0, %s29
      %s46 = sphi 0, %s30
      %s50 = sphi 0, %s50
      %s52 = sphi 0, %s50
      %s53 = sphi 0, %s52
      %s67 = sphi 0, %s53
      %s71 = sphi 0, %s71
      %s73 = sphi 0, %s71
      %s74 = sphi 0, %s73
      %s88 = sphi 0, %s74
      %s94 = sphi 0, %s96
      %s97 = sphi 0, %s94
      %s98 = sphi 0, %s97
      %s114 = sphi 0, %s98
    $region4: #{tpu_custom_call.1} parent=1 // loop_header_branch
      %19 = sbr.rel (%p17) target = $region8
    $region5: #{tpu_custom_call.1} parent=1 // loop_body
      %s21 = ssub.s32 %s16, 1
      %s22 = ssub.s32 %s16, 2
      %s23 = sadd.s32 %s16, 1
      %s24 = ssub.s32 %s16, %s23
      %p25 = scmp.eq.s32.totalorder %s24, 0
      %s27 = sadd.s32 %s26, 1
      %s28 = scalar_select %p25, %s26, %s27
      %p31 = pneg %p25
      %p32 = scmp.eq.s32.totalorder %s16, 1
      %p33 = por %p31, %p32
      %p34 = scmp.ne.s32.totalorder %s26, %s29
      %p35 = scmp.eq.s32.totalorder %s16, 0
      %p36 = por %p34, %p35
      %p37 = scmp.ne.s32.totalorder %s26, %s29
      %p38 = scmp.eq.s32.totalorder %s21, 1
      %p39 = por %p37, %p38
      %p40 = scmp.ne.s32.totalorder %s29, %s30
      %p41 = scmp.eq.s32.totalorder %s21, 0
      %p42 = por %p40, %p41
      %p43 = scmp.ne.s32.totalorder %s29, %s30
      %p44 = scmp.eq.s32.totalorder %s22, 1
      %p45 = por %p43, %p44
      %p47 = scmp.ne.s32.totalorder %s30, %s46
      %p48 = scmp.eq.s32.totalorder %s22, 0
      %p49 = por %p47, %p48
      %s51 = sadd.s32 %s50, 1
      %p54 = scmp.eq.s32.totalorder %s16, 1
      %p55 = scmp.ne.s32.totalorder %s50, %s52
      %p56 = scmp.eq.s32.totalorder %s16, 0
      %p57 = por %p55, %p56
      %p58 = scmp.ne.s32.totalorder %s50, %s52
      %p59 = scmp.eq.s32.totalorder %s21, 1
      %p60 = por %p58, %p59
      %p61 = scmp.ne.s32.totalorder %s52, %s53
      %p62 = scmp.eq.s32.totalorder %s21, 0
      %p63 = por %p61, %p62
      %p64 = scmp.ne.s32.totalorder %s52, %s53
      %p65 = scmp.eq.s32.totalorder %s22, 1
      %p66 = por %p64, %p65
      %p68 = scmp.ne.s32.totalorder %s53, %s67
      %p69 = scmp.eq.s32.totalorder %s22, 0
      %p70 = por %p68, %p69
      %s72 = sadd.s32 %s71, 1
      %p75 = scmp.eq.s32.totalorder %s16, 1
      %p76 = scmp.ne.s32.totalorder %s71, %s73
      %p77 = scmp.eq.s32.totalorder %s16, 0
      %p78 = por %p76, %p77
      %p79 = scmp.ne.s32.totalorder %s71, %s73
      %p80 = scmp.eq.s32.totalorder %s21, 1
      %p81 = por %p79, %p80
      %p82 = scmp.ne.s32.totalorder %s73, %s74
      %p83 = scmp.eq.s32.totalorder %s21, 0
      %p84 = por %p82, %p83
      %p85 = scmp.ne.s32.totalorder %s73, %s74
      %p86 = scmp.eq.s32.totalorder %s22, 1
      %p87 = por %p85, %p86
      %p89 = scmp.ne.s32.totalorder %s74, %s88
      %p90 = scmp.eq.s32.totalorder %s22, 0
      %p91 = por %p89, %p90
      %s92 = ssub.s32 %s16, %s23
      %p93 = scmp.eq.s32.totalorder %s92, 0
      %s95 = sadd.s32 %s94, 1
      %s96 = scalar_select %p93, %s94, %s95
      %p99 = pneg %p93
      %p100 = scmp.eq.s32.totalorder %s16, 1
      %p101 = por %p99, %p100
      %p102 = scmp.ne.s32.totalorder %s94, %s97
      %p103 = scmp.eq.s32.totalorder %s16, 0
      %p104 = por %p102, %p103
      %p105 = scmp.ne.s32.totalorder %s94, %s97
      %p106 = scmp.eq.s32.totalorder %s21, 1
      %p107 = por %p105, %p106
      %p108 = scmp.ne.s32.totalorder %s97, %s98
      %p109 = scmp.eq.s32.totalorder %s21, 0
      %p110 = por %p108, %p109
      %p111 = scmp.ne.s32.totalorder %s97, %s98
      %p112 = scmp.eq.s32.totalorder %s22, 1
      %p113 = por %p111, %p112
      %p115 = scmp.ne.s32.totalorder %s98, %s114
      %p116 = scmp.eq.s32.totalorder %s22, 0
      %p117 = por %p115, %p116
      %p118 = scmp.le.s32.totalorder 1, %s16
      %p119 = scmp.lt.s32.totalorder %s16, 3
      %p120 = pnand %p118, %p119
      %p121 = pneg %p120
      // Predicated region
      $region9: #{tpu_custom_call.1} parent=5 // pred_check
        _
      $region10: #{tpu_custom_call.1} parent=5 // pred_check_branch
        %123 = sbr.rel (%p120) target = $region12
      $region11: #{tpu_custom_call.1} parent=5 // pred_region
        %s124 = ssub.s32 %s16, 1
        // Predicated region
        $region13: #{tpu_custom_call.1} parent=11 // pred_check
          %p125 = pneg %p63
        $region14: #{tpu_custom_call.1} parent=11 // pred_check_branch
          %127 = sbr.rel (%p125) target = $region16
        $region15: #{tpu_custom_call.1} parent=11 // pred_region
          %s129 = ssub.s32 4608, 4608
          %130 = vsyncadd [#allocation6], %s129
          %s131 = sshll.u32 [#allocation5], 4
          %s132 = int_to_ptr.vmem [resolvable:$true] %s131
          %137 = dma.hbm_to_vmem [thread:$0]  %s1, 4608, %s132, [#allocation6], 128, 128, 8
        $region16: #{tpu_custom_call.1} parent=11 // pred_fallthru
          _
        // Predicated region
        $region17: #{tpu_custom_call.1} parent=11 // pred_check
          %p138 = pneg %p84
        $region18: #{tpu_custom_call.1} parent=11 // pred_check_branch
          %140 = sbr.rel (%p138) target = $region20
        $region19: #{tpu_custom_call.1} parent=11 // pred_region
          _
        $region20: #{tpu_custom_call.1} parent=11 // pred_fallthru
          _
      $region12: #{tpu_custom_call.1} parent=5 // pred_fallthru
        _
      %p141 = scmp.lt.s32.totalorder %s16, 2
      // Predicated region
      $region21: #{tpu_custom_call.1} parent=5 // pred_check
        %p142 = pneg %p141
      $region22: #{tpu_custom_call.1} parent=5 // pred_check_branch
        %144 = sbr.rel (%p142) target = $region24
      $region23: #{tpu_custom_call.1} parent=5 // pred_region
        // Predicated region
        $region25: #{tpu_custom_call.1} parent=23 // pred_check
          %p145 = pneg %p36
        $region26: #{tpu_custom_call.1} parent=23 // pred_check_branch
          %147 = sbr.rel (%p145) target = $region28
        $region27: #{tpu_custom_call.1} parent=23 // pred_region
          %s148 = sand.u32 %s26, 1
          %s149 = scalar_lea.sflag [#allocation3], %s148
          %s150 = sand.u32 %s26, 1
          %s151 = smul.addr %s150, 8
          %s152 = scalar_lea.vmem [#allocation2], %s151
          %s154 = ssub.s32 128, 128
          %155 = vsyncadd %s149, %s154
          %s156 = smul.addr %s16, 128
          %s157 = scalar_lea.hbm %s0, %s156
          %s159 = sshll.u32 %s152, 4
          %s160 = int_to_ptr.vmem [resolvable:$true] %s159
          %162 = dma.hbm_to_vmem [thread:$0]  %s157, 128, %s160, %s149
        $region28: #{tpu_custom_call.1} parent=23 // pred_fallthru
          _
      $region24: #{tpu_custom_call.1} parent=5 // pred_fallthru
        _
      %p163 = scmp.le.s32.totalorder 1, %s16
      %p164 = scmp.lt.s32.totalorder %s16, 3
      %p165 = pnand %p163, %p164
      %p166 = pneg %p165
      // Predicated region
      $region29: #{tpu_custom_call.1} parent=5 // pred_check
        _
      $region30: #{tpu_custom_call.1} parent=5 // pred_check_branch
        %168 = sbr.rel (%p165) target = $region32
      $region31: #{tpu_custom_call.1} parent=5 // pred_region
        %s169 = ssub.s32 %s16, 1
        %s170 = sand.u32 %s29, 1
        %s171 = scalar_lea.sflag [#allocation3], %s170
        %s172 = sand.u32 %s29, 1
        %s173 = smul.addr %s172, 8
        %s174 = scalar_lea.vmem [#allocation2], %s173
        // Predicated region
        $region33: #{tpu_custom_call.1} parent=31 // pred_check
          %p175 = pneg %p42
        $region34: #{tpu_custom_call.1} parent=31 // pred_check_branch
          %177 = sbr.rel (%p175) target = $region36
        $region35: #{tpu_custom_call.1} parent=31 // pred_region
          %178 = dma.done %s171, 128
        $region36: #{tpu_custom_call.1} parent=31 // pred_fallthru
          _
        // Predicated region
        $region37: #{tpu_custom_call.1} parent=31 // pred_check
          %p179 = pneg %p63
        $region38: #{tpu_custom_call.1} parent=31 // pred_check_branch
          %181 = sbr.rel (%p179) target = $region40
        $region39: #{tpu_custom_call.1} parent=31 // pred_region
          %182 = dma.done [#allocation6], 4608
        $region40: #{tpu_custom_call.1} parent=31 // pred_fallthru
          _
        %s183 = sand.u32 %s29, 1
        %s184 = scalar_lea.sflag [#allocation3], %s183
        %s185 = sand.u32 %s29, 1
        %s186 = smul.addr %s185, 8
        %s187 = scalar_lea.vmem [#allocation2], %s186
        %p188 = pneg %p42
        %p189 = pneg %p39
        %p190 = pneg %p63
        %p191 = pneg %p60
        %p192 = pneg %p84
        %p193 = pneg %p81
        %p194 = pneg %p110
        %p195 = pneg %p107
        %s196 = sand.u32 %s97, 1
        %s197 = scalar_lea.sflag [#allocation4], %s196
        %s198 = sand.u32 %s97, 1
        %s199 = smul.addr %s198, 8
        %s200 = scalar_lea.vmem [#allocation7], %s199
        %v201 = vld [vmem:[%s174] sm:$0xff]
        %v202 = vld [vmem:[#allocation5] sm:$0xff]
        %v203 = vld [vmem:[#allocation5 + $0x8] sm:$0xff]
        %v204 = vld [vmem:[#allocation5 + $0x10] sm:$0xff]
        %v205 = vld [vmem:[#allocation5 + $0x18] sm:$0xff]
        %v206 = vld [vmem:[%s2] sm:$0x1]
        %v207 = vlaneseq
        %v208 = vshrl.u32 %v207, 7
        %v209 = vsub.s32 0, %v208
        %v210 = vrot.slane %v206, %v209
        %vm211 = vcmask 261120
        %v213 = vsel %vm211, %v201, 0
        %215 = vmatprep.subr.mxu0 0.0
        %216 = vmatpush1.msra.mxu0 %v202
        %217 = vmatprep.subr.mxu0 0.0
        %218 = vmatpush1.msra.mxu0 %v203
        %219 = vmatprep.subr.mxu0 0.0
        %220 = vmatpush1.msra.mxu0 %v204
        %221 = vmatprep.subr.mxu0 0.0
        %222 = vmatpush1.msra.mxu0 %v205
        %223 = vmatprep.subr.mxu0 0.0
        %224 = vmatpush1.msra.mxu0 0.0
        %225 = vmatprep.subr.mxu0 0.0
        %226 = vmatpush1.msra.mxu0 0.0
        %227 = vmatprep.subr.mxu0 0.0
        %228 = vmatpush1.msra.mxu0 0.0
        %229 = vmatprep.subr.mxu0 0.0
        %230 = vmatpush1.msra.mxu0 0.0
        %231 = vmatprep.subr.mxu0 0.0
        %232 = vmatpush1.msra.mxu0 0.0
        %233 = vmatprep.subr.mxu0 0.0
        %234 = vmatpush1.msra.mxu0 0.0
        %235 = vmatprep.subr.mxu0 0.0
        %236 = vmatpush1.msra.mxu0 0.0
        %237 = vmatprep.subr.mxu0 0.0
        %238 = vmatpush1.msra.mxu0 0.0
        %239 = vmatprep.subr.mxu0 0.0
        %240 = vmatpush1.msra.mxu0 0.0
        %241 = vmatprep.subr.mxu0 0.0
        %242 = vmatpush1.msra.mxu0 0.0
        %243 = vmatprep.subr.mxu0 0.0
        %244 = vmatpush1.msra.mxu0 0.0
        %245 = vmatprep.subr.mxu0 0.0
        %246 = vmatpush1.msra.mxu0 0.0
        %247 = vmatprep.subr.mxu0 0.0
        %248 = vmatpush1.msra.mxu0 0.0
        %249 = vmatprep.subr.mxu0 0.0
        %250 = vmatpush1.msra.mxu0 0.0
        %251 = vmatprep.subr.mxu0 0.0
        %252 = vmatpush1.msra.mxu0 0.0
        %253 = vmatprep.subr.mxu0 0.0
        %254 = vmatpush1.msra.mxu0 0.0
        %255 = vmatprep.subr.mxu0 0.0
        %256 = vmatpush1.msra.mxu0 0.0
        %257 = vmatprep.subr.mxu0 0.0
        %258 = vmatpush1.msra.mxu0 0.0
        %259 = vmatprep.subr.mxu0 0.0
        %260 = vmatpush1.msra.mxu0 0.0
        %261 = vmatprep.subr.mxu0 0.0
        %262 = vmatpush1.msra.mxu0 0.0
        %263 = vmatprep.subr.mxu0 0.0
        %264 = vmatpush1.msra.mxu0 0.0
        %265 = vmatprep.subr.mxu0 0.0
        %266 = vmatpush1.msra.mxu0 0.0
        %267 = vmatprep.subr.mxu0 0.0
        %268 = vmatpush1.msra.mxu0 0.0
        %269 = vmatprep.subr.mxu0 0.0
        %270 = vmatpush1.msra.mxu0 0.0
        %271 = vmatprep.subr.mxu0 0.0
        %272 = vmatpush1.msra.mxu0 0.0
        %273 = vmatprep.subr.mxu0 0.0
        %274 = vmatpush1.msra.mxu0 0.0
        %275 = vmatprep.subr.mxu0 0.0
        %276 = vmatpush1.msra.mxu0 0.0
        %277 = vmatprep.subr.mxu0 0.0
        %278 = vmatpush1.msra.mxu0 0.0
        %279 = vmatprep.mubr.f32.mxu0 0.0
        %280 = vmatmul.mubr.f32.gmra.mrb[0].mxu0 %v213
        %v281 = vpop.f32.mrb[0].mxu0
        %v282 = vadd.f32 %v210, %v281
        %v283 = vpop.f32.mrb[0].mxu0
        %284 = vdwg.mxu0
        %v285 = vmax.f32 %v282, 0.0
        %v286 = vld [vmem:[#allocation5 + $0x20] sm:$0xff]
        %v287 = vld [vmem:[#allocation5 + $0x28] sm:$0xff]
        %v288 = vld [vmem:[#allocation5 + $0x30] sm:$0xff]
        %v289 = vld [vmem:[#allocation5 + $0x38] sm:$0xff]
        %v290 = vld [vmem:[#allocation5 + $0x40] sm:$0xff]
        %v291 = vld [vmem:[#allocation5 + $0x48] sm:$0xff]
        %v292 = vld [vmem:[#allocation5 + $0x50] sm:$0xff]
        %v293 = vld [vmem:[#allocation5 + $0x58] sm:$0xff]
        %v294 = vld [vmem:[#allocation5 + $0x60] sm:$0xff]
        %v295 = vld [vmem:[#allocation5 + $0x68] sm:$0xff]
        %v296 = vld [vmem:[#allocation5 + $0x70] sm:$0xff]
        %v297 = vld [vmem:[#allocation5 + $0x78] sm:$0xff]
        %v298 = vld [vmem:[#allocation5 + $0x80] sm:$0xff]
        %v299 = vld [vmem:[#allocation5 + $0x88] sm:$0xff]
        %v300 = vld [vmem:[#allocation5 + $0x90] sm:$0xff]
        %v301 = vld [vmem:[#allocation5 + $0x98] sm:$0xff]
        %v302 = vld [vmem:[%s2 + $0x1] sm:$0x1]
        %v303 = vlaneseq
        %v304 = vshrl.u32 %v303, 7
        %v305 = vsub.s32 0, %v304
        %v306 = vrot.slane %v302, %v305
        %307 = vmatprep.subr.mxu0 0.0
        %308 = vmatpush1.msra.mxu0 %v286
        %309 = vmatprep.subr.mxu0 0.0
        %310 = vmatpush1.msra.mxu0 %v287
        %311 = vmatprep.subr.mxu0 0.0
        %312 = vmatpush1.msra.mxu0 %v288
        %313 = vmatprep.subr.mxu0 0.0
        %314 = vmatpush1.msra.mxu0 %v289
        %315 = vmatprep.subr.mxu0 0.0
        %316 = vmatpush1.msra.mxu0 %v290
        %317 = vmatprep.subr.mxu0 0.0
        %318 = vmatpush1.msra.mxu0 %v291
        %319 = vmatprep.subr.mxu0 0.0
        %320 = vmatpush1.msra.mxu0 %v292
        %321 = vmatprep.subr.mxu0 0.0
        %322 = vmatpush1.msra.mxu0 %v293
        %323 = vmatprep.subr.mxu0 0.0
        %324 = vmatpush1.msra.mxu0 %v294
        %325 = vmatprep.subr.mxu0 0.0
        %326 = vmatpush1.msra.mxu0 %v295
        %327 = vmatprep.subr.mxu0 0.0
        %328 = vmatpush1.msra.mxu0 %v296
        %329 = vmatprep.subr.mxu0 0.0
        %330 = vmatpush1.msra.mxu0 %v297
        %331 = vmatprep.subr.mxu0 0.0
        %332 = vmatpush1.msra.mxu0 %v298
        %333 = vmatprep.subr.mxu0 0.0
        %334 = vmatpush1.msra.mxu0 %v299
        %335 = vmatprep.subr.mxu0 0.0
        %336 = vmatpush1.msra.mxu0 %v300
        %337 = vmatprep.subr.mxu0 0.0
        %338 = vmatpush1.msra.mxu0 %v301
        %339 = vmatprep.subr.mxu0 0.0
        %340 = vmatpush1.msra.mxu0 0.0
        %341 = vmatprep.subr.mxu0 0.0
        %342 = vmatpush1.msra.mxu0 0.0
        %343 = vmatprep.subr.mxu0 0.0
        %344 = vmatpush1.msra.mxu0 0.0
        %345 = vmatprep.subr.mxu0 0.0
        %346 = vmatpush1.msra.mxu0 0.0
        %347 = vmatprep.subr.mxu0 0.0
        %348 = vmatpush1.msra.mxu0 0.0
        %349 = vmatprep.subr.mxu0 0.0
        %350 = vmatpush1.msra.mxu0 0.0
        %351 = vmatprep.subr.mxu0 0.0
        %352 = vmatpush1.msra.mxu0 0.0
        %353 = vmatprep.subr.mxu0 0.0
        %354 = vmatpush1.msra.mxu0 0.0
        %355 = vmatprep.subr.mxu0 0.0
        %356 = vmatpush1.msra.mxu0 0.0
        %357 = vmatprep.subr.mxu0 0.0
        %358 = vmatpush1.msra.mxu0 0.0
        %359 = vmatprep.subr.mxu0 0.0
        %360 = vmatpush1.msra.mxu0 0.0
        %361 = vmatprep.subr.mxu0 0.0
        %362 = vmatpush1.msra.mxu0 0.0
        %363 = vmatprep.subr.mxu0 0.0
        %364 = vmatpush1.msra.mxu0 0.0
        %365 = vmatprep.subr.mxu0 0.0
        %366 = vmatpush1.msra.mxu0 0.0
        %367 = vmatprep.subr.mxu0 0.0
        %368 = vmatpush1.msra.mxu0 0.0
        %369 = vmatprep.subr.mxu0 0.0
        %370 = vmatpush1.msra.mxu0 0.0
        %371 = vmatprep.mubr.f32.mxu0 0.0
        %372 = vmatmul.mubr.f32.gmra.mrb[0].mxu0 %v285
        %v373 = vpop.f32.mrb[0].mxu0
        %v374 = vadd.f32 %v306, %v373
        %v375 = vpop.f32.mrb[0].mxu0
        %376 = vdwg.mxu0
        %v377 = vmax.f32 %v374, 0.0
        %v378 = vld [vmem:[#allocation5 + $0xa0] sm:$0xff]
        %v379 = vld [vmem:[#allocation5 + $0xa8] sm:$0xff]
        %v380 = vld [vmem:[#allocation5 + $0xb0] sm:$0xff]
        %v381 = vld [vmem:[#allocation5 + $0xb8] sm:$0xff]
        %v382 = vld [vmem:[#allocation5 + $0xc0] sm:$0xff]
        %v383 = vld [vmem:[#allocation5 + $0xc8] sm:$0xff]
        %v384 = vld [vmem:[#allocation5 + $0xd0] sm:$0xff]
        %v385 = vld [vmem:[#allocation5 + $0xd8] sm:$0xff]
        %v386 = vld [vmem:[#allocation5 + $0xe0] sm:$0xff]
        %v387 = vld [vmem:[#allocation5 + $0xe8] sm:$0xff]
        %v388 = vld [vmem:[#allocation5 + $0xf0] sm:$0xff]
        %v389 = vld [vmem:[#allocation5 + $0xf8] sm:$0xff]
        %v390 = vld [vmem:[#allocation5 + $0x100] sm:$0xff]
        %v391 = vld [vmem:[#allocation5 + $0x108] sm:$0xff]
        %v392 = vld [vmem:[#allocation5 + $0x110] sm:$0xff]
        %v393 = vld [vmem:[#allocation5 + $0x118] sm:$0xff]
        %v394 = vld [vmem:[%s2 + $0x2] sm:$0x1]
        %v395 = vlaneseq
        %v396 = vshrl.u32 %v395, 7
        %v397 = vsub.s32 0, %v396
        %v398 = vrot.slane %v394, %v397
        %399 = vmatprep.subr.mxu0 0.0
        %400 = vmatpush1.msra.mxu0 %v378
        %401 = vmatprep.subr.mxu0 0.0
        %402 = vmatpush1.msra.mxu0 %v379
        %403 = vmatprep.subr.mxu0 0.0
        %404 = vmatpush1.msra.mxu0 %v380
        %405 = vmatprep.subr.mxu0 0.0
        %406 = vmatpush1.msra.mxu0 %v381
        %407 = vmatprep.subr.mxu0 0.0
        %408 = vmatpush1.msra.mxu0 %v382
        %409 = vmatprep.subr.mxu0 0.0
        %410 = vmatpush1.msra.mxu0 %v383
        %411 = vmatprep.subr.mxu0 0.0
        %412 = vmatpush1.msra.mxu0 %v384
        %413 = vmatprep.subr.mxu0 0.0
        %414 = vmatpush1.msra.mxu0 %v385
        %415 = vmatprep.subr.mxu0 0.0
        %416 = vmatpush1.msra.mxu0 %v386
        %417 = vmatprep.subr.mxu0 0.0
        %418 = vmatpush1.msra.mxu0 %v387
        %419 = vmatprep.subr.mxu0 0.0
        %420 = vmatpush1.msra.mxu0 %v388
        %421 = vmatprep.subr.mxu0 0.0
        %422 = vmatpush1.msra.mxu0 %v389
        %423 = vmatprep.subr.mxu0 0.0
        %424 = vmatpush1.msra.mxu0 %v390
        %425 = vmatprep.subr.mxu0 0.0
        %426 = vmatpush1.msra.mxu0 %v391
        %427 = vmatprep.subr.mxu0 0.0
        %428 = vmatpush1.msra.mxu0 %v392
        %429 = vmatprep.subr.mxu0 0.0
        %430 = vmatpush1.msra.mxu0 %v393
        %431 = vmatprep.subr.mxu0 0.0
        %432 = vmatpush1.msra.mxu0 0.0
        %433 = vmatprep.subr.mxu0 0.0
        %434 = vmatpush1.msra.mxu0 0.0
        %435 = vmatprep.subr.mxu0 0.0
        %436 = vmatpush1.msra.mxu0 0.0
        %437 = vmatprep.subr.mxu0 0.0
        %438 = vmatpush1.msra.mxu0 0.0
        %439 = vmatprep.subr.mxu0 0.0
        %440 = vmatpush1.msra.mxu0 0.0
        %441 = vmatprep.subr.mxu0 0.0
        %442 = vmatpush1.msra.mxu0 0.0
        %443 = vmatprep.subr.mxu0 0.0
        %444 = vmatpush1.msra.mxu0 0.0
        %445 = vmatprep.subr.mxu0 0.0
        %446 = vmatpush1.msra.mxu0 0.0
        %447 = vmatprep.subr.mxu0 0.0
        %448 = vmatpush1.msra.mxu0 0.0
        %449 = vmatprep.subr.mxu0 0.0
        %450 = vmatpush1.msra.mxu0 0.0
        %451 = vmatprep.subr.mxu0 0.0
        %452 = vmatpush1.msra.mxu0 0.0
        %453 = vmatprep.subr.mxu0 0.0
        %454 = vmatpush1.msra.mxu0 0.0
        %455 = vmatprep.subr.mxu0 0.0
        %456 = vmatpush1.msra.mxu0 0.0
        %457 = vmatprep.subr.mxu0 0.0
        %458 = vmatpush1.msra.mxu0 0.0
        %459 = vmatprep.subr.mxu0 0.0
        %460 = vmatpush1.msra.mxu0 0.0
        %461 = vmatprep.subr.mxu0 0.0
        %462 = vmatpush1.msra.mxu0 0.0
        %463 = vmatprep.mubr.f32.mxu0 0.0
        %464 = vmatmul.mubr.f32.gmra.mrb[0].mxu0 %v377
        %v465 = vpop.f32.mrb[0].mxu0
        %v466 = vadd.f32 %v398, %v465
        %v467 = vpop.f32.mrb[0].mxu0
        %468 = vdwg.mxu0
        %469 = vst [vmem:[%s200] sm:$0xff] %v466
        %s470 = sand.u32 %s97, 1
        %s471 = scalar_lea.sflag [#allocation4], %s470
        %s472 = sand.u32 %s97, 1
        %s473 = smul.addr %s472, 8
        %s474 = scalar_lea.vmem [#allocation7], %s473
        // Predicated region
        $region41: #{tpu_custom_call.1} parent=31 // pred_check
          %p475 = pneg %p107
        $region42: #{tpu_custom_call.1} parent=31 // pred_check_branch
          %477 = sbr.rel (%p475) target = $region44
        $region43: #{tpu_custom_call.1} parent=31 // pred_region
          %s479 = ssub.s32 128, 128
          %480 = vsyncadd %s471, %s479
          %s481 = smul.addr %s21, 128
          %s482 = scalar_lea.hbm %s3, %s481
          %s484 = sshll.u32 %s474, 4
          %s485 = int_to_ptr.vmem [resolvable:$true] %s484
          %487 = dma.vmem_to_hbm [thread:$0]  %s485, 128, %s482, %s471
        $region44: #{tpu_custom_call.1} parent=31 // pred_fallthru
          _
      $region32: #{tpu_custom_call.1} parent=5 // pred_fallthru
        _
      %p488 = scmp.le.s32.totalorder 2, %s16
      // Predicated region
      $region45: #{tpu_custom_call.1} parent=5 // pred_check
        %p489 = pneg %p488
      $region46: #{tpu_custom_call.1} parent=5 // pred_check_branch
        %491 = sbr.rel (%p489) target = $region48
      $region47: #{tpu_custom_call.1} parent=5 // pred_region
        %s492 = ssub.s32 %s16, 2
        // Predicated region
        $region49: #{tpu_custom_call.1} parent=47 // pred_check
          %p493 = pneg %p113
        $region50: #{tpu_custom_call.1} parent=47 // pred_check_branch
          %495 = sbr.rel (%p493) target = $region52
        $region51: #{tpu_custom_call.1} parent=47 // pred_region
          %s496 = sand.u32 %s98, 1
          %s497 = scalar_lea.sflag [#allocation4], %s496
          %s498 = sand.u32 %s98, 1
          %s499 = smul.addr %s498, 8
          %s500 = scalar_lea.vmem [#allocation7], %s499
          %501 = dma.done %s497, 128
        $region52: #{tpu_custom_call.1} parent=47 // pred_fallthru
          _
      $region48: #{tpu_custom_call.1} parent=5 // pred_fallthru
        _
    $region6: #{tpu_custom_call.1} parent=1 // loop_footer
      %s20 = sadd.s32 1, %s16
    $region7: #{tpu_custom_call.1} parent=1 // loop_footer_branch
      %15 = sbr.rel target = $region3
    $region8: #{tpu_custom_call.1} parent=1 // loop_exit
      _
    %502 = vsyncpa [#allocation3], 1
    %s503 = scalar_lea.sflag [#allocation3], 1
    %504 = vsyncpa %s503, 1
    %505 = vsyncpa [#allocation6], 1
    %506 = vsyncpa [#allocation4], 1
    %s507 = scalar_lea.sflag [#allocation4], 1
    %508 = vsyncpa %s507, 1

</llo_original>
